<compile_context>
chip_gen: v7x
topology: tpu7x:2x2x1
jax: 0.10.0
libtpu: 0.0.40
codegen_flags: <defaults>
</compile_context>

<pallas_src>
import functools
import math

import jax
import jax.numpy as jnp
from jax import lax
from jax.experimental import pallas as pl
from jax.experimental.pallas import tpu as pltpu


# ---------------------------------------------------------------------------
# Generation-aware knobs
# ---------------------------------------------------------------------------
@functools.lru_cache(maxsize=None)
def _device_kind() -> str:
    try:
        return jax.devices()[0].device_kind.lower()
    except Exception:
        return ""


@functools.lru_cache(maxsize=None)
def _prefers_small_tiles() -> bool:
    # v3/v4/v5 parts have 128-wide MXUs (and v5e the least HBM bandwidth):
    # prefer 128-granular tiles and shorter K tiles there.
    kind = _device_kind()
    return any(t in kind for t in ("v3", "v4", "v5"))


@functools.lru_cache(maxsize=None)
def _vmem_limit_bytes() -> int:
    # Physical VMEM: 128 MiB on v5e/v6e, 64 MiB per TensorCore on v7x.  Use
    # ~3/4 of it (96 MiB on 128 MiB parts, 48 MiB on v7x) so the big parts are
    # not capped by a v7x-driven constant while v7x keeps compiler headroom.
    try:
        cap = int(getattr(pltpu.get_tpu_info(), "vmem_capacity_bytes"))
    except Exception:
        cap = 64 * 1024 * 1024
    if cap <= 0:
        cap = 64 * 1024 * 1024
    return min((cap * 3) // 4, 100 * 1024 * 1024)


def _itemsize(dt) -> int:
    return jnp.dtype(dt).itemsize


def _pick_tile(dim, candidates):
    """Largest candidate that evenly divides `dim`; else the full extent."""
    for c in candidates:
        if c <= dim and dim % c == 0:
            return c
    return dim


def _pick_resident_tm(M, per_row_bytes, resident_bytes, limit, candidates):
    """Largest tm (dividing M) whose double-buffered activation/output blocks
    plus the VMEM-resident weight fit the budget; None if nothing fits."""
    for tm in tuple(candidates) + (M,):
        if tm > M or M % tm != 0:
            continue
        if resident_bytes + 2 * tm * per_row_bytes <= limit:
            return tm
    return None


# ---------------------------------------------------------------------------
# Linear projections
# ---------------------------------------------------------------------------
def _linear_ws_kernel(x_ref, w_ref, b_ref, o_ref, *, compute_dtype):
    """Weight-stationary: the full (K, N) weight lives in VMEM (block index is
    constant, so it is DMA'd once); activations stream with a large M tile."""
    x = x_ref[...]
    if x.dtype != compute_dtype:
        x = x.astype(compute_dtype)
    acc = jnp.dot(x, w_ref[...], preferred_element_type=jnp.float32)
    o_ref[...] = (acc + b_ref[...]).astype(o_ref.dtype)


def _linear_qkv_kernel(x_ref, w_ref, b_ref, oq_ref, ok_ref, ov_ref,
                       *, d_model, compute_dtype):
    """Fused X @ [Wq|Wk|Wv] + b with three separate (tm, d_model) outputs, so
    no packed (M, 3D) slab is written to / strided-sliced from HBM."""
    x = x_ref[...]
    if x.dtype != compute_dtype:
        x = x.astype(compute_dtype)
    acc = jnp.dot(x, w_ref[...], preferred_element_type=jnp.float32) + b_ref[...]
    oq_ref[...] = acc[:, :d_model].astype(oq_ref.dtype)
    ok_ref[...] = acc[:, d_model:2 * d_model].astype(ok_ref.dtype)
    ov_ref[...] = acc[:, 2 * d_model:].astype(ov_ref.dtype)


def _linear_tiled_kernel(x_ref, w_ref, b_ref, o_ref, acc_ref, *, compute_dtype):
    """Fallback K-reduction matmul for weights too large to keep VMEM-resident."""
    @pl.when(pl.program_id(2) == 0)
    def _():
        acc_ref[...] = jnp.zeros_like(acc_ref)

    x = x_ref[...]
    if x.dtype != compute_dtype:
        x = x.astype(compute_dtype)
    w = w_ref[...]
    if w.dtype != compute_dtype:
        w = w.astype(compute_dtype)
    acc_ref[...] += jnp.dot(x, w, preferred_element_type=jnp.float32)

    @pl.when(pl.program_id(2) == pl.num_programs(2) - 1)
    def _():
        o_ref[...] = (acc_ref[...] + b_ref[...]).astype(o_ref.dtype)


def linear(x, w, b, *, out_dtype, compute_dtype=jnp.bfloat16):
    """x:(M,K) @ w:(K,N) + b:(1,N) -> (M,N), f32 accumulation on the MXU."""
    M, K = x.shape
    N = w.shape[1]
    limit = _vmem_limit_bytes()
    small = _prefers_small_tiles()

    # --- Weight-stationary path (preferred): weight streams from HBM once.
    tm_cands = (256, 128, 64, 32, 16, 8) if small else (512, 256, 128, 64, 32, 16, 8)
    resident = 2 * K * N * _itemsize(w.dtype) + 2 * N * _itemsize(b.dtype)
    per_row = K * _itemsize(x.dtype) + N * _itemsize(out_dtype)
    tm = _pick_resident_tm(M, per_row, resident, limit - (4 << 20), tm_cands)
    if tm is not None:
        kern = functools.partial(_linear_ws_kernel, compute_dtype=compute_dtype)
        return pl.pallas_call(
            kern,
            out_shape=jax.ShapeDtypeStruct((M, N), out_dtype),
            grid_spec=pltpu.PrefetchScalarGridSpec(
                num_scalar_prefetch=0,
                grid=(M // tm,),
                in_specs=[
                    pl.BlockSpec((tm, K), lambda i: (i, 0)),
                    pl.BlockSpec((K, N), lambda i: (0, 0)),   # weight-resident
                    pl.BlockSpec((1, N), lambda i: (0, 0)),
                ],
                out_specs=pl.BlockSpec((tm, N), lambda i: (i, 0)),
            ),
            compiler_params=pltpu.CompilerParams(
                dimension_semantics=("parallel",),
                vmem_limit_bytes=limit,
            ),
        )(x, w, b)

    # --- Tiled K-reduction fallback (large weights).
    tm = _pick_tile(M, (128, 64, 32, 16, 8) if small else (256, 128, 64, 32, 16, 8))
    tn = _pick_tile(N, (128, 256) if small else (256, 128))
    tk = _pick_tile(K, (256, 128) if small else (512, 256, 128))
    grid = (M // tm, N // tn, K // tk)
    kern = functools.partial(_linear_tiled_kernel, compute_dtype=compute_dtype)
    return pl.pallas_call(
        kern,
        out_shape=jax.ShapeDtypeStruct((M, N), out_dtype),
        grid_spec=pltpu.PrefetchScalarGridSpec(
            num_scalar_prefetch=0,
            grid=grid,
            in_specs=[
                pl.BlockSpec((tm, tk), lambda i, j, k: (i, k)),
                pl.BlockSpec((tk, tn), lambda i, j, k: (k, j)),
                pl.BlockSpec((1, tn), lambda i, j, k: (0, j)),
            ],
            out_specs=pl.BlockSpec((tm, tn), lambda i, j, k: (i, j)),
            scratch_shapes=[pltpu.VMEM((tm, tn), jnp.float32)],
        ),
        compiler_params=pltpu.CompilerParams(
            dimension_semantics=("parallel", "parallel", "arbitrary"),
            vmem_limit_bytes=limit,
        ),
    )(x, w, b)


def linear_qkv(x, w_qkv, b_qkv, d_model, *, out_dtype, compute_dtype=jnp.bfloat16):
    """Fused QKV projection with three separate outputs.  Returns None when the
    fused (K, 3*d_model) weight does not fit the generation's VMEM budget
    (e.g. large d_model on v7x) — caller falls back to three projections."""
    M, K = x.shape
    N3 = w_qkv.shape[1]
    limit = _vmem_limit_bytes()
    small = _prefers_small_tiles()
    tm_cands = (256, 128, 64, 32, 16, 8) if small else (512, 256, 128, 64, 32, 16, 8)
    resident = 2 * K * N3 * _itemsize(w_qkv.dtype) + 2 * N3 * _itemsize(b_qkv.dtype)
    per_row = K * _itemsize(x.dtype) + N3 * _itemsize(out_dtype)
    tm = _pick_resident_tm(M, per_row, resident, limit - (4 << 20), tm_cands)
    if tm is None:
        return None
    kern = functools.partial(_linear_qkv_kernel, d_model=d_model,
                             compute_dtype=compute_dtype)
    return pl.pallas_call(
        kern,
        out_shape=tuple(jax.ShapeDtypeStruct((M, d_model), out_dtype)
                        for _ in range(3)),
        grid_spec=pltpu.PrefetchScalarGridSpec(
            num_scalar_prefetch=0,
            grid=(M // tm,),
            in_specs=[
                pl.BlockSpec((tm, K), lambda i: (i, 0)),
                pl.BlockSpec((K, N3), lambda i: (0, 0)),      # weight-resident
                pl.BlockSpec((1, N3), lambda i: (0, 0)),
            ],
            out_specs=tuple(pl.BlockSpec((tm, d_model), lambda i: (i, 0))
                            for _ in range(3)),
        ),
        compiler_params=pltpu.CompilerParams(
            dimension_semantics=("parallel",),
            vmem_limit_bytes=limit,
        ),
    )(x, w_qkv, b_qkv)


# ---------------------------------------------------------------------------
# Flash-style multi-head attention (online softmax over KV tiles)
# ---------------------------------------------------------------------------
def _mha_flash_kernel(q_ref, k_ref, v_ref, o_ref, q_sc, m_sc, l_sc, acc_sc,
                      *, h, d_k, compute_dtype):
    kv = pl.program_id(2)

    @pl.when(kv == 0)
    def _():
        m_sc[...] = jnp.full_like(m_sc, -jnp.inf)
        l_sc[...] = jnp.zeros_like(l_sc)
        acc_sc[...] = jnp.zeros_like(acc_sc)
        # Stage per-head Q slices once per (b, q-tile): the Q block is resident
        # across the kv axis, so the head extraction is not repeated per step.
        # (1/sqrt(d_k) is already folded into w_q/b_q, so no scale/cast here.)
        q2 = q_ref[0]
        if q2.dtype != compute_dtype:
            q2 = q2.astype(compute_dtype)
        for hd in range(h):
            q_sc[hd] = q2[:, hd * d_k:(hd + 1) * d_k]

    k2 = k_ref[0]                       # (tkv, D) lane-dense, already bf16
    v2 = v_ref[0]
    if k2.dtype != compute_dtype:
        k2 = k2.astype(compute_dtype)
    if v2.dtype != compute_dtype:
        v2 = v2.astype(compute_dtype)

    dn = (((1,), (1,)), ((), ()))       # contract last dims; no explicit K^T

    # Per-head MXU passes: with d_k < 128 the QK^T contraction cannot be packed
    # across heads without mixing them, so heads stay as an in-kernel static
    # loop; the score block keeps tkv (>=128) as its lane-dense output dim.
    for hd in range(h):
        sl = slice(hd * d_k, (hd + 1) * d_k)
        s = lax.dot_general(q_sc[hd], k2[:, sl], dn,
                            preferred_element_type=jnp.float32)          # (tq, tkv)
        m_prev = m_sc[hd]                                                 # (tq, 1)
        m_new = jnp.maximum(m_prev, jnp.max(s, axis=-1, keepdims=True))
        alpha = jnp.exp(m_prev - m_new)
        p = jnp.exp(s - m_new)                                            # f32
        l_sc[hd] = alpha * l_sc[hd] + jnp.sum(p, axis=-1, keepdims=True)
        acc_sc[:, sl] = alpha * acc_sc[:, sl] + jnp.dot(
            p.astype(compute_dtype), v2[:, sl],
            preferred_element_type=jnp.float32)
        m_sc[hd] = m_new

    @pl.when(kv == pl.num_programs(2) - 1)
    def _():
        # Normalize per head inside the lane-dense accumulator, then a single
        # unmasked (tq, D) store (no concatenate / lane interleave).
        for hd in range(h):
            sl = slice(hd * d_k, (hd + 1) * d_k)
            acc_sc[:, sl] = acc_sc[:, sl] * pl.reciprocal(l_sc[hd], approx=True)
        o_ref[0] = acc_sc[...].astype(o_ref.dtype)


def mha_attention(q, k, v, h, *, out_dtype=jnp.bfloat16, compute_dtype=jnp.bfloat16):
    """q, k, v: (B, S, D) with D = h*d_k  ->  (B, S, D) in `out_dtype`."""
    B, S, D = q.shape
    d_k = D // h
    limit = _vmem_limit_bytes()
    small = _prefers_small_tiles()
    # Cap tq/tkv at 256 (128 on v5e) so the per-head f32 score block stays
    # <= ~256 KiB and the unrolled head loop does not spill.
    cand = (128, 64, 32, 16, 8) if small else (256, 128, 64, 32, 16, 8)
    tq = _pick_tile(S, cand)
    tkv = _pick_tile(S, cand)
    # Megacore (v7x): B * (S // tq) tiles are split across the two TensorCores
    # via the parallel grid axes; keep that product >= 2 for balance.
    grid = (B, S // tq, S // tkv)
    kern = functools.partial(_mha_flash_kernel, h=h, d_k=d_k,
                             compute_dtype=compute_dtype)
    q_spec = pl.BlockSpec((1, tq, D), lambda b, qi, ki: (b, qi, 0))
    kv_spec = pl.BlockSpec((1, tkv, D), lambda b, qi, ki: (b, ki, 0))
    return pl.pallas_call(
        kern,
        out_shape=jax.ShapeDtypeStruct((B, S, D), out_dtype),
        grid_spec=pltpu.PrefetchScalarGridSpec(
            num_scalar_prefetch=0,
            grid=grid,
            in_specs=[q_spec, kv_spec, kv_spec],
            out_specs=pl.BlockSpec((1, tq, D), lambda b, qi, ki: (b, qi, 0)),
            scratch_shapes=[
                pltpu.VMEM((h, tq, d_k), compute_dtype),  # staged per-head Q
                pltpu.VMEM((h, tq, 1), jnp.float32),      # running max m
                pltpu.VMEM((h, tq, 1), jnp.float32),      # running sum l
                pltpu.VMEM((tq, D), jnp.float32),         # lane-dense output acc
            ],
        ),
        compiler_params=pltpu.CompilerParams(
            dimension_semantics=("parallel", "parallel", "arbitrary"),
            vmem_limit_bytes=limit,
        ),
    )(q, k, v)


# ---------------------------------------------------------------------------
# Module (parameters + glue in plain JAX, hot path in Pallas)
# ---------------------------------------------------------------------------
class MultiHeadAttentionBlock:
    def __init__(self, d_model: int, h: int, dropout: float, key,
                 compute_dtype=jnp.bfloat16):
        assert d_model % h == 0, "d_model not divisible by h"
        self.d_model = d_model
        self.h = h
        self.d_k = d_model // h
        self.dropout_p = dropout            # p=0.0 -> identity
        self.compute_dtype = compute_dtype  # MXU input dtype (f32 accumulation)

        ks = jax.random.split(key, 8)
        bound = 1.0 / math.sqrt(d_model)

        def init_w(k_):  # stored as (in, out) so linear() does x @ W + b
            return jax.random.uniform(
                k_, (d_model, d_model), jnp.float32, -bound, bound)

        def init_b(k_):
            return jax.random.uniform(k_, (1, d_model), jnp.float32, -bound, bound)

        w_q, b_q = init_w(ks[0]), init_b(ks[1])
        w_k, b_k = init_w(ks[2]), init_b(ks[3])
        w_v, b_v = init_w(ks[4]), init_b(ks[5])
        w_o, b_o = init_w(ks[6]), init_b(ks[7])

        # Fold the 1/sqrt(d_k) query scale into w_q / b_q (free at init; deletes
        # a per-kv-step VPU multiply in the attention hot loop).
        scale = 1.0 / math.sqrt(self.d_k)
        w_q = w_q * scale
        b_q = b_q * scale

        # Weights stored in bf16 (halves weight DMA, no per-tile casts).
        # Biases stay f32: they are added to the f32 accumulator (negligible DMA).
        cd = compute_dtype
        self.w_q, self.b_q = w_q.astype(cd), b_q
        self.w_k, self.b_k = w_k.astype(cd), b_k
        self.w_v, self.b_v = w_v.astype(cd), b_v
        self.w_o, self.b_o = w_o.astype(cd), b_o
        # Fused QKV weights for the self-attention fast path (one matmul,
        # activations read from HBM once).
        self.w_qkv = jnp.concatenate([self.w_q, self.w_k, self.w_v], axis=1)
        self.b_qkv = jnp.concatenate([self.b_q, self.b_k, self.b_v], axis=1)

    def __call__(self, q, k, v, mask=None):
        # mask is ignored: the reference uses a NON-inplace masked_fill and
        # discards the result, so any real mask would silently have no effect.
        B, S, D = q.shape
        cd = self.compute_dtype
        xq = q.reshape(B * S, D)

        fused = None
        if q is k and k is v:
            # Self-attention: single fused X @ [Wq|Wk|Wv] with three outputs
            # (no strided HBM re-slicing).  Falls back to three projections if
            # the fused weight does not fit the VMEM budget (e.g. v7x, big D).
            fused = linear_qkv(xq, self.w_qkv, self.b_qkv, D,
                               out_dtype=cd, compute_dtype=cd)
        if fused is not None:
            query, key_, value = fused
        else:
            query = linear(xq, self.w_q, self.b_q, out_dtype=cd, compute_dtype=cd)
            key_ = linear(k.reshape(B * S, D), self.w_k, self.b_k,
                          out_dtype=cd, compute_dtype=cd)
            value = linear(v.reshape(B * S, D), self.w_v, self.b_v,
                           out_dtype=cd, compute_dtype=cd)

        # (B, S, D) reshapes are free (no HBM transpose); heads are split
        # inside the attention kernel with in-register lane slices.
        x = mha_attention(query.reshape(B, S, D), key_.reshape(B, S, D),
                          value.reshape(B, S, D), self.h,
                          out_dtype=cd, compute_dtype=cd)

        out = linear(x.reshape(B * S, D), self.w_o, self.b_o,
                     out_dtype=jnp.float32, compute_dtype=cd)
        return out.reshape(B, S, D)


# ---------------------------------------------------------------------------
# Pure-JAX reference (same parameters / bf16-MXU-input / f32-accumulate policy)
# ---------------------------------------------------------------------------
def reference_forward(blk, q, k, v):
    B, S, D = q.shape
    h, d_k = blk.h, blk.d_k
    cd = blk.compute_dtype

    def lin(x, w, b, out_dt):
        y = jnp.dot(x.astype(cd), w.astype(cd),
                    preferred_element_type=jnp.float32) + b
        return y.astype(out_dt)

    def split(x):  # (B,S,D) -> (B,h,S,d_k)
        return x.reshape(B, S, h, d_k).transpose(0, 2, 1, 3)

    # NOTE: 1/sqrt(d_k) is already folded into blk.w_q / blk.b_q.
    qh = split(lin(q, blk.w_q, blk.b_q, cd).astype(jnp.float32))
    kh = split(lin(k, blk.w_k, blk.b_k, cd).astype(jnp.float32))
    vh = split(lin(v, blk.w_v, blk.b_v, cd).astype(jnp.float32))
    s = jnp.einsum("bhqd,bhkd->bhqk", qh.astype(cd), kh.astype(cd),
                   preferred_element_type=jnp.float32)
    p = jax.nn.softmax(s, axis=-1)
    x = jnp.einsum("bhqk,bhkd->bhqd", p.astype(cd), vh.astype(cd),
                   preferred_element_type=jnp.float32)
    x = x.transpose(0, 2, 1, 3).reshape(B, S, D).astype(cd)
    return lin(x, blk.w_o, blk.b_o, jnp.float32)


if __name__ == "__main__":
    B, S, d_model, h = 2, 8, 32, 4
    root = jax.random.PRNGKey(0)
    kq, kk, kv, kp = jax.random.split(root, 4)
    q = jax.random.normal(kq, (B, S, d_model), jnp.float32)
    k = jax.random.normal(kk, (B, S, d_model), jnp.float32)
    v = jax.random.normal(kv, (B, S, d_model), jnp.float32)

    block = MultiHeadAttentionBlock(d_model=d_model, h=h, dropout=0.0, key=kp)

    # Cross-attention path (weight-stationary projections).
    out = jax.block_until_ready(block(q, k, v, mask=None))
    ref = reference_forward(block, q, k, v)
    assert out.shape == (B, S, d_model), out.shape
    assert jnp.allclose(out, ref, atol=5e-2, rtol=5e-2), float(
        jnp.max(jnp.abs(out - ref)))

    # Self-attention path (fused QKV projection, three outputs).
    out_self = jax.block_until_ready(block(q, q, q, mask=None))
    ref_self = reference_forward(block, q, q, q)
    assert jnp.allclose(out_self, ref_self, atol=5e-2, rtol=5e-2), float(
        jnp.max(jnp.abs(out_self - ref_self)))

    print("KERNEL_OK")
</pallas_src>

<mosaic_0001>
module attributes {stable_mosaic.version = 11 : i64} {
  func.func @_linear_ws_kernel(%arg0: i32, %arg1: memref<16x32xf32, #tpu.memory_space<vmem>>, %arg2: memref<32x32xbf16, #tpu.memory_space<vmem>>, %arg3: memref<1x32xf32, #tpu.memory_space<vmem>>, %arg4: memref<16x32xbf16, #tpu.memory_space<vmem>>) attributes {dimension_semantics = [#tpu.dimension_semantics<parallel>], iteration_bounds = array<i64: 1>, scalar_prefetch = 0 : i64, scratch_operands = 0 : i64, tpu.core_type = #tpu.core_type<tc>, window_params = [{transform_indices = @transform_0, window_bounds = array<i64: 16, 32>}, {pipeline_mode = #tpu.pipeline_mode<synchronous>, transform_indices = @transform_1, window_bounds = array<i64: 32, 32>}, {pipeline_mode = #tpu.pipeline_mode<synchronous>, transform_indices = @transform_2, window_bounds = array<i64: 1, 32>}, {transform_indices = @transform_3, window_bounds = array<i64: 16, 32>}]} {
    %c0 = arith.constant 0 : index
    %c0_0 = arith.constant 0 : index
    %0 = vector.load %arg1[%c0, %c0_0] : memref<16x32xf32, #tpu.memory_space<vmem>>, vector<16x32xf32>
    %1 = arith.truncf %0 : vector<16x32xf32> to vector<16x32xbf16>
    %c0_1 = arith.constant 0 : index
    %c0_2 = arith.constant 0 : index
    %2 = vector.load %arg2[%c0_1, %c0_2] : memref<32x32xbf16, #tpu.memory_space<vmem>>, vector<32x32xbf16>
    %cst = arith.constant dense<0.000000e+00> : vector<16x32xf32>
    %3 = tpu.matmul %1, %2, %cst {dimension_numbers = #tpu.dot_dimension_numbers<[1], [0], [0], [1], [0, 0, 1, 1], [], []>} : vector<16x32xbf16>, vector<32x32xbf16>, vector<16x32xf32> -> vector<16x32xf32>
    %c0_3 = arith.constant 0 : index
    %c0_4 = arith.constant 0 : index
    %4 = vector.load %arg3[%c0_3, %c0_4] : memref<1x32xf32, #tpu.memory_space<vmem>>, vector<1x32xf32>
    %5 = vector.broadcast %4 : vector<1x32xf32> to vector<16x32xf32>
    %6 = arith.addf %3, %5 : vector<16x32xf32>
    %7 = arith.truncf %6 : vector<16x32xf32> to vector<16x32xbf16>
    %c0_5 = arith.constant 0 : index
    %c0_6 = arith.constant 0 : index
    %8 = vector.load %arg4[%c0_5, %c0_6] : memref<16x32xbf16, #tpu.memory_space<vmem>>, vector<16x32xbf16>
    tpu.vector_store %arg4[%c0_5, %c0_6], %7 {strides = array<i32>} : memref<16x32xbf16, #tpu.memory_space<vmem>>, vector<16x32xbf16>,
    return
  }
  func.func @transform_0(%arg0: i32) -> (i32, i32) {
    %c0_i32 = arith.constant 0 : i32
    %c0_i32_0 = arith.constant 0 : i32
    return %arg0, %c0_i32 : i32, i32
  }
  func.func @transform_1(%arg0: i32) -> (i32, i32) {
    %c0_i32 = arith.constant 0 : i32
    %c0_i32_0 = arith.constant 0 : i32
    %c0_i32_1 = arith.constant 0 : i32
    return %c0_i32, %c0_i32_0 : i32, i32
  }
  func.func @transform_2(%arg0: i32) -> (i32, i32) {
    %c0_i32 = arith.constant 0 : i32
    %c0_i32_0 = arith.constant 0 : i32
    %c0_i32_1 = arith.constant 0 : i32
    return %c0_i32, %c0_i32_0 : i32, i32
  }
  func.func @transform_3(%arg0: i32) -> (i32, i32) {
    %c0_i32 = arith.constant 0 : i32
    %c0_i32_0 = arith.constant 0 : i32
    return %arg0, %c0_i32 : i32, i32
  }
}

</mosaic_0001>

<llo_original>
// kernel: tpu_custom_call.1
$region0: #{tpu_custom_call.1}
  #allocation0 [shape = 'u32[]', space=smem, size = 0x4, offset = 0x4, fixed_abs, tag = 'smem constant byte address 0x4 - core index']
  #allocation1 [shape = 'u32[144,128]{1,0:T(1,128)}', space=vmem, size = 0x12000, scoped, tag = 'internal scratch']
  %s0 = inlined_call_operand.hbm [shape: f32[16,32], index: 0, kind: input, shape index: {}]
  %s1 = inlined_call_operand.hbm [shape: bf16[32,32], index: 1, kind: input, shape index: {}]
  %s2 = inlined_call_operand.vmem [shape: f32[1,32], index: 2, kind: input, shape index: {}]
  %s3 = inlined_call_operand.hbm [shape: bf16[16,32], index: 3, kind: output, shape index: {}]
  %s4 = sld [smem:[#allocation0]]
  $region30: #{tpu_custom_call.1} parent=0
    _
  %s6 = ssub.s32 1, %s4
  %s7 = scalar_select 0, %s6, %s4
  $region1: #{tpu_custom_call.1} parent=0
    #allocation2 [shape = 'u8[8192]{0}', space=vmem, size = 0x2000, scoped, tag = 'input window, operand 0, single buffered']
    #allocation3 [shape = 's32[1]{0}', space=sflag, size = 0x4, scoped, tag = 'scoped memory for tpu_custom_call.1']
    #allocation4 [shape = 's32[1]{0}', space=sflag, size = 0x4, scoped, tag = 'scoped memory for tpu_custom_call.1']
    #allocation5 [shape = 'u8[8192]{0}', space=vmem, size = 0x2000, scoped, tag = 'input window, operand 1, single buffered']
    #allocation6 [shape = 's32[1]{0}', space=sflag, size = 0x4, scoped, tag = 'scoped memory for tpu_custom_call.1']
    #allocation7 [shape = 'u8[4096]{0}', space=vmem, size = 0x1000, scoped, tag = 'output window, operand 0, single buffered']
    %8 = vsyncpa [#allocation3], 0
    %9 = vsyncpa [#allocation6], 0
    %10 = vsyncpa [#allocation4], 0
    // Predicated region
    $region2: #{tpu_custom_call.1} parent=1 // pred_check
      _
    $region3: #{tpu_custom_call.1} parent=1 // pred_check_branch
      %12 = sbr.rel (0) target = $region5
    $region4: #{tpu_custom_call.1} parent=1 // pred_region
      %s14 = ssub.s32 256, 256
      %15 = vsyncadd [#allocation3], %s14
      %s16 = sshll.u32 [#allocation2], 4
      %s17 = int_to_ptr.vmem [resolvable:$true] %s16
      %22 = dma.hbm_to_vmem [thread:$0]  %s0, 256, %s17, [#allocation3], 128, 128, 8
    $region5: #{tpu_custom_call.1} parent=1 // pred_fallthru
      _
    // Predicated region
    $region6: #{tpu_custom_call.1} parent=1 // pred_check
      _
    $region7: #{tpu_custom_call.1} parent=1 // pred_check_branch
      %24 = sbr.rel (0) target = $region9
    $region8: #{tpu_custom_call.1} parent=1 // pred_region
      %s26 = ssub.s32 256, 256
      %27 = vsyncadd [#allocation6], %s26
      %s28 = sshll.u32 [#allocation5], 4
      %s29 = int_to_ptr.vmem [resolvable:$true] %s28
      %34 = dma.hbm_to_vmem [thread:$0]  %s1, 256, %s29, [#allocation6], 64, 64, 4
    $region9: #{tpu_custom_call.1} parent=1 // pred_fallthru
      _
    // Predicated region
    $region10: #{tpu_custom_call.1} parent=1 // pred_check
      _
    $region11: #{tpu_custom_call.1} parent=1 // pred_check_branch
      %36 = sbr.rel (0) target = $region13
    $region12: #{tpu_custom_call.1} parent=1 // pred_region
      _
    $region13: #{tpu_custom_call.1} parent=1 // pred_fallthru
      _
    // Predicated region
    $region14: #{tpu_custom_call.1} parent=1 // pred_check
      _
    $region15: #{tpu_custom_call.1} parent=1 // pred_check_branch
      %38 = sbr.rel (0) target = $region17
    $region16: #{tpu_custom_call.1} parent=1 // pred_region
      %39 = dma.done [#allocation3], 256
    $region17: #{tpu_custom_call.1} parent=1 // pred_fallthru
      _
    // Predicated region
    $region18: #{tpu_custom_call.1} parent=1 // pred_check
      _
    $region19: #{tpu_custom_call.1} parent=1 // pred_check_branch
      %41 = sbr.rel (0) target = $region21
    $region20: #{tpu_custom_call.1} parent=1 // pred_region
      %42 = dma.done [#allocation6], 256
    $region21: #{tpu_custom_call.1} parent=1 // pred_fallthru
      _
    %v44 = vld [vmem:[#allocation2] sm:$0xff]
    %v45 = vld [vmem:[#allocation2 + $0x8] sm:$0xff]
    %v46 = vpack.c.bf16 %v45, %v44
    %v47 = vld [vmem:[#allocation5] sm:$0xf]
    %v48 = vld [vmem:[#allocation5 + $0x4] sm:$0xf]
    %v49 = vld [vmem:[#allocation5 + $0x8] sm:$0xf]
    %v50 = vld [vmem:[#allocation5 + $0xc] sm:$0xf]
    %v51 = vld [vmem:[%s2] sm:$0x1]
    %v53 = vlaneseq
    %v54 = vshrl.u32 %v53, 7
    %v55 = vsub.s32 0, %v54
    %v56 = vrot.slane %v51, %v55
    %v62 = vunpack.c.l.b16 %v47
    %v63 = vunpack.c.l.b16 %v48
    %v64 = vunpack.c.l.b16 %v49
    %v65 = vunpack.c.l.b16 %v50
    %v66 = vpack.c.b16 %v63, %v62
    %v67 = vpack.c.b16 %v65, %v64
    %vm70 = vcmask 261120
    %v72 = vsel %vm70, %v46, 0
    %74 = vmatprep.subr.bf16.mxu0 0
    %75 = vmatpush1.bf16.msra.mxu0 %v66
    %76 = vmatprep.subr.bf16.mxu0 0
    %77 = vmatpush1.bf16.msra.mxu0 %v67
    %78 = vmatprep.subr.bf16.mxu0 0
    %79 = vmatpush1.bf16.msra.mxu0 0
    %80 = vmatprep.subr.bf16.mxu0 0
    %81 = vmatpush1.bf16.msra.mxu0 0
    %82 = vmatprep.subr.bf16.mxu0 0
    %83 = vmatpush1.bf16.msra.mxu0 0
    %84 = vmatprep.subr.bf16.mxu0 0
    %85 = vmatpush1.bf16.msra.mxu0 0
    %86 = vmatprep.subr.bf16.mxu0 0
    %87 = vmatpush1.bf16.msra.mxu0 0
    %88 = vmatprep.subr.bf16.mxu0 0
    %89 = vmatpush1.bf16.msra.mxu0 0
    %90 = vmatprep.subr.bf16.mxu0 0
    %91 = vmatpush1.bf16.msra.mxu0 0
    %92 = vmatprep.subr.bf16.mxu0 0
    %93 = vmatpush1.bf16.msra.mxu0 0
    %94 = vmatprep.subr.bf16.mxu0 0
    %95 = vmatpush1.bf16.msra.mxu0 0
    %96 = vmatprep.subr.bf16.mxu0 0
    %97 = vmatpush1.bf16.msra.mxu0 0
    %98 = vmatprep.subr.bf16.mxu0 0
    %99 = vmatpush1.bf16.msra.mxu0 0
    %100 = vmatprep.subr.bf16.mxu0 0
    %101 = vmatpush1.bf16.msra.mxu0 0
    %102 = vmatprep.subr.bf16.mxu0 0
    %103 = vmatpush1.bf16.msra.mxu0 0
    %104 = vmatprep.subr.bf16.mxu0 0
    %105 = vmatpush1.bf16.msra.mxu0 0
    %106 = vmatprep.mubr.bf16.mxu0 0
    %107 = vmatmul.mubr.bf16.gmra.mrb[0].mxu0 %v72
    %v108 = vpop.f32.mrb[0].mxu0
    %v109 = vadd.f32 %v56, %v108
    %v110 = vpop.f32.mrb[0].mxu0
    %v111 = vpop.f32.mrb[0].mxu0
    %v112 = vadd.f32 %v56, %v111
    %v113 = vpop.f32.mrb[0].mxu0
    %114 = vdwg.mxu0
    %v115 = vpack.c.bf16 %v112, %v109
    %v117 = vunpack.c.l.b16 %v115
    %v118 = vunpack.c.h.b16 %v115
    %v119 = vpack.c.b16 %v117, %v117
    %v120 = vpack.c.b16 %v118, %v118
    %vm123 = vcmask 257024
    %124 = vst.msk [vmem:[#allocation7] sm:$0xf] %vm123, %v119
    %125 = vst.msk [vmem:[#allocation7 + $0x4] sm:$0xf] %vm123, %v120
    // Predicated region
    $region22: #{tpu_custom_call.1} parent=1 // pred_check
      _
    $region23: #{tpu_custom_call.1} parent=1 // pred_check_branch
      %127 = sbr.rel (0) target = $region25
    $region24: #{tpu_custom_call.1} parent=1 // pred_region
      %s129 = ssub.s32 128, 128
      %130 = vsyncadd [#allocation4], %s129
      %s131 = sshll.u32 [#allocation7], 4
      %s132 = int_to_ptr.vmem [resolvable:$true] %s131
      %137 = dma.vmem_to_hbm [thread:$0]  %s132, 128, %s3, [#allocation4], 64, 64, 4
    $region25: #{tpu_custom_call.1} parent=1 // pred_fallthru
      _
    // Predicated region
    $region26: #{tpu_custom_call.1} parent=1 // pred_check
      _
    $region27: #{tpu_custom_call.1} parent=1 // pred_check_branch
      %139 = sbr.rel (0) target = $region29
    $region28: #{tpu_custom_call.1} parent=1 // pred_region
      %140 = dma.done [#allocation4], 128
    $region29: #{tpu_custom_call.1} parent=1 // pred_fallthru
      _
    %141 = vsyncpa [#allocation3], 1
    %142 = vsyncpa [#allocation6], 1
    %143 = vsyncpa [#allocation4], 1

</llo_original>
